<compile_context>
chip_gen: v7x
topology: tpu7x:2x2x1
jax: 0.10.0
libtpu: 0.0.40
codegen_flags: <defaults>
</compile_context>

<pallas_src>
import math

import jax
import jax.numpy as jnp
from jax import lax
from jax.experimental import pallas as pl
from jax.experimental.pallas import tpu as pltpu

_LANES = 128
_MASK_VALUE = -1e30


def _round_up(n, m):
    return ((n + m - 1) // m) * m


def self_attention_v2(x, w_query, w_key, w_value, *, tile=256):
    """x: (B, T, d_in); w_*: (d_out, d_in) in nn.Linear layout. Returns (B, T, d_out)."""
    B, T, d_in = x.shape
    d_out = w_query.shape[0]
    out_dtype = x.dtype

    # ---- one-off weight packing (would be done once at model-init in a real model) ----
    d_out_p = _round_up(d_out, _LANES)               # lane-dense padded head dim
    scale = 1.0 / math.sqrt(float(d_out))            # scale uses the TRUE d_out
    wq = w_query.astype(jnp.float32) * scale         # fold softmax scale into Q proj
    wk = w_key.astype(jnp.float32)
    wv = w_value.astype(jnp.float32)
    if d_out_p != d_out:
        zpad = jnp.zeros((d_out_p - d_out, d_in), jnp.float32)
        wq = jnp.concatenate([wq, zpad], axis=0)
        wk = jnp.concatenate([wk, zpad], axis=0)
        wv = jnp.concatenate([wv, zpad], axis=0)
    # Pre-transposed packed weight: (d_in, 3*d_out_p), bf16 MXU operand.
    wqkv_t = jnp.concatenate([wq, wk, wv], axis=0).T.astype(jnp.bfloat16)

    # ---- tiling / sequence padding (tiles stay sublane-dense for bf16: multiple of 16) ----
    t_tile = tile if T >= tile else _round_up(T, 16)
    T_p = _round_up(T, t_tile)
    n_t = T_p // t_tile
    needs_mask = T_p != T
    x_p = jnp.pad(x, ((0, 0), (0, T_p - T), (0, 0))) if needs_mask else x

    # ============================ 1) QKV projection kernel ============================
    def proj_kernel(x_ref, w_ref, qkv_ref):
        # Cast x to bf16 in-kernel (keeps HBM traffic at one read of x, bf16 MXU mode).
        x_b = x_ref[...].astype(jnp.bfloat16)
        qkv_ref[...] = jnp.dot(
            x_b, w_ref[...], preferred_element_type=jnp.float32
        ).astype(qkv_ref.dtype)

    proj_block_bytes = (
        t_tile * d_in * x.dtype.itemsize          # x tile
        + d_in * 3 * d_out_p * 2                  # packed weight (bf16), resident
        + t_tile * 3 * d_out_p * 2                # qkv output tile (bf16)
    )
    proj_vmem = int(min(max(2 * proj_block_bytes + (8 << 20), 32 << 20), 100 << 20))

    qkv = pl.pallas_call(
        proj_kernel,
        out_shape=jax.ShapeDtypeStruct((B, T_p, 3 * d_out_p), jnp.bfloat16),
        grid_spec=pltpu.PrefetchScalarGridSpec(
            num_scalar_prefetch=0,
            grid=(B, n_t),
            in_specs=[
                pl.BlockSpec((pl.Squeezed(), t_tile, d_in), lambda b, i: (b, i, 0)),
                pl.BlockSpec((d_in, 3 * d_out_p), lambda b, i: (0, 0)),
            ],
            out_specs=pl.BlockSpec((pl.Squeezed(), t_tile, 3 * d_out_p),
                                   lambda b, i: (b, i, 0)),
        ),
        compiler_params=pltpu.CompilerParams(
            dimension_semantics=("parallel", "parallel"),
            vmem_limit_bytes=proj_vmem),
    )(x_p, wqkv_t)

    # ============================ 2) Flash attention kernel ===========================
    tq = tk = t_tile

    def flash_kernel(q_ref, k_ref, v_ref, o_ref, m_sc, l_sc, acc_sc):
        ki = pl.program_id(2)

        @pl.when(ki == 0)
        def _init():
            m_sc[...] = jnp.full((tq, 1), -jnp.inf, dtype=jnp.float32)
            l_sc[...] = jnp.zeros((tq, 1), dtype=jnp.float32)
            acc_sc[...] = jnp.zeros((tq, d_out_p), dtype=jnp.float32)

        # scores = q @ k^T (Q already carries the 1/sqrt(d_out) scale), f32 accumulate.
        s = lax.dot_general(q_ref[...], k_ref[...], (((1,), (1,)), ((), ())),
                            preferred_element_type=jnp.float32)        # (tq, tk)
        if needs_mask:  # static python bool: only emitted when T was padded
            kpos = ki * tk + lax.broadcasted_iota(jnp.int32, (tq, tk), 1)
            s = jnp.where(kpos < T, s, _MASK_VALUE)

        # online (numerically stable) softmax update
        m_prev = m_sc[...]
        m_new = jnp.maximum(m_prev, jnp.max(s, axis=-1, keepdims=True))
        alpha = jnp.exp(m_prev - m_new)
        p = jnp.exp(s - m_new)
        l_sc[...] = alpha * l_sc[...] + jnp.sum(p, axis=-1, keepdims=True)
        acc_sc[...] = alpha * acc_sc[...] + jnp.dot(
            p.astype(v_ref.dtype), v_ref[...], preferred_element_type=jnp.float32)
        m_sc[...] = m_new

        @pl.when(ki == pl.num_programs(2) - 1)
        def _finalize():
            inv_l = pl.reciprocal(l_sc[...], approx=True)   # EUP slot, ~free
            o_ref[...] = (acc_sc[...] * inv_l).astype(o_ref.dtype)

    flash_block_bytes = (
        tq * d_out_p * 2                      # q tile (bf16)
        + 2 * tk * d_out_p * 2                # k, v tiles (bf16)
        + tq * d_out_p * x.dtype.itemsize     # output tile
    )
    flash_scratch_bytes = 2 * tq * 4 + tq * d_out_p * 4
    flash_vmem = int(min(max(2 * flash_block_bytes + flash_scratch_bytes + (8 << 20),
                             32 << 20), 100 << 20))

    out_p = pl.pallas_call(
        flash_kernel,
        out_shape=jax.ShapeDtypeStruct((B, T_p, d_out_p), out_dtype),
        grid_spec=pltpu.PrefetchScalarGridSpec(
            num_scalar_prefetch=0,
            grid=(B, n_t, n_t),
            in_specs=[
                # three views of the packed QKV buffer (block index on last dim picks Q/K/V)
                pl.BlockSpec((pl.Squeezed(), tq, d_out_p), lambda b, qi, ki: (b, qi, 0)),
                pl.BlockSpec((pl.Squeezed(), tk, d_out_p), lambda b, qi, ki: (b, ki, 1)),
                pl.BlockSpec((pl.Squeezed(), tk, d_out_p), lambda b, qi, ki: (b, ki, 2)),
            ],
            out_specs=pl.BlockSpec((pl.Squeezed(), tq, d_out_p),
                                   lambda b, qi, ki: (b, qi, 0)),
            scratch_shapes=[
                pltpu.VMEM((tq, 1), jnp.float32),         # running max m
                pltpu.VMEM((tq, 1), jnp.float32),         # running denom l
                pltpu.VMEM((tq, d_out_p), jnp.float32),   # output accumulator
            ],
        ),
        compiler_params=pltpu.CompilerParams(
            dimension_semantics=("parallel", "parallel", "arbitrary"),
            vmem_limit_bytes=flash_vmem),
    )(qkv, qkv, qkv)

    out = out_p
    if needs_mask:
        out = out[:, :T, :]
    if d_out_p != d_out:
        out = out[..., :d_out]
    return out


def self_attention_v2_ref(x, w_query, w_key, w_value):
    q = x @ w_query.T
    k = x @ w_key.T
    v = x @ w_value.T
    scores = jnp.einsum("btd,bsd->bts", q, k) / math.sqrt(k.shape[-1])
    w = jax.nn.softmax(scores, axis=-1)
    return jnp.einsum("bts,bsd->btd", w, v)


if __name__ == "__main__":
    B, T, d_in, d_out = 2, 8, 32, 16

    key = jax.random.PRNGKey(0)
    kx, kq, kk, kv = jax.random.split(key, 4)

    x = jax.random.normal(kx, (B, T, d_in), dtype=jnp.float32)
    # nn.Linear(d_in, d_out, bias=False) weights have shape (d_out, d_in)
    bound = 1.0 / math.sqrt(d_in)
    w_query = jax.random.uniform(kq, (d_out, d_in), jnp.float32, -bound, bound)
    w_key = jax.random.uniform(kk, (d_out, d_in), jnp.float32, -bound, bound)
    w_value = jax.random.uniform(kv, (d_out, d_in), jnp.float32, -bound, bound)

    out = self_attention_v2(x, w_query, w_key, w_value)
    out = jax.block_until_ready(out)

    ref = self_attention_v2_ref(x, w_query, w_key, w_value)
    assert out.shape == (B, T, d_out)
    # bf16 MXU operands (f32 accumulation) -> bf16-level tolerance vs the f32 reference.
    assert jnp.allclose(out, ref, atol=2e-2, rtol=2e-2), "mismatch vs reference"

    print("KERNEL_OK")
</pallas_src>

<mosaic_0001>
module attributes {stable_mosaic.version = 11 : i64} {
  func.func @proj_kernel(%arg0: i32, %arg1: i32, %arg2: memref<1x16x32xf32, #tpu.memory_space<vmem>>, %arg3: memref<32x384xbf16, #tpu.memory_space<vmem>>, %arg4: memref<1x16x384xbf16, #tpu.memory_space<vmem>>) attributes {dimension_semantics = [#tpu.dimension_semantics<parallel>, #tpu.dimension_semantics<parallel>], iteration_bounds = array<i64: 2, 1>, scalar_prefetch = 0 : i64, scratch_operands = 0 : i64, tpu.core_type = #tpu.core_type<tc>, window_params = [{transform_indices = @transform_0, window_bounds = array<i64: 1, 16, 32>}, {pipeline_mode = #tpu.pipeline_mode<synchronous>, transform_indices = @transform_1, window_bounds = array<i64: 32, 384>}, {transform_indices = @transform_2, window_bounds = array<i64: 1, 16, 384>}]} {
    %c0 = arith.constant 0 : index
    %c0_0 = arith.constant 0 : index
    %c0_1 = arith.constant 0 : index
    %0 = vector.load %arg2[%c0, %c0_0, %c0_1] : memref<1x16x32xf32, #tpu.memory_space<vmem>>, vector<1x16x32xf32>
    %1 = vector.shape_cast %0 : vector<1x16x32xf32> to vector<16x32xf32>
    %2 = arith.truncf %1 : vector<16x32xf32> to vector<16x32xbf16>
    %c0_2 = arith.constant 0 : index
    %c0_3 = arith.constant 0 : index
    %3 = vector.load %arg3[%c0_2, %c0_3] : memref<32x384xbf16, #tpu.memory_space<vmem>>, vector<32x384xbf16>
    %cst = arith.constant dense<0.000000e+00> : vector<16x384xf32>
    %4 = tpu.matmul %2, %3, %cst {dimension_numbers = #tpu.dot_dimension_numbers<[1], [0], [0], [1], [0, 0, 1, 1], [], []>} : vector<16x32xbf16>, vector<32x384xbf16>, vector<16x384xf32> -> vector<16x384xf32>
    %5 = arith.truncf %4 : vector<16x384xf32> to vector<16x384xbf16>
    %c0_4 = arith.constant 0 : index
    %c0_5 = arith.constant 0 : index
    %c0_6 = arith.constant 0 : index
    %6 = vector.load %arg4[%c0_4, %c0_5, %c0_6] : memref<1x16x384xbf16, #tpu.memory_space<vmem>>, vector<1x16x384xbf16>
    %7 = vector.shape_cast %6 : vector<1x16x384xbf16> to vector<16x384xbf16>
    %8 = vector.shape_cast %5 : vector<16x384xbf16> to vector<1x16x384xbf16>
    tpu.vector_store %arg4[%c0_4, %c0_5, %c0_6], %8 {strides = array<i32>} : memref<1x16x384xbf16, #tpu.memory_space<vmem>>, vector<1x16x384xbf16>,
    return
  }
  func.func @transform_0(%arg0: i32, %arg1: i32) -> (i32, i32, i32) {
    %c0_i32 = arith.constant 0 : i32
    %c0_i32_0 = arith.constant 0 : i32
    return %arg0, %arg1, %c0_i32 : i32, i32, i32
  }
  func.func @transform_1(%arg0: i32, %arg1: i32) -> (i32, i32) {
    %c0_i32 = arith.constant 0 : i32
    %c0_i32_0 = arith.constant 0 : i32
    %c0_i32_1 = arith.constant 0 : i32
    return %c0_i32, %c0_i32_0 : i32, i32
  }
  func.func @transform_2(%arg0: i32, %arg1: i32) -> (i32, i32, i32) {
    %c0_i32 = arith.constant 0 : i32
    %c0_i32_0 = arith.constant 0 : i32
    return %arg0, %arg1, %c0_i32 : i32, i32, i32
  }
}

</mosaic_0001>

<llo_original>
// kernel: tpu_custom_call.1
$region0: #{tpu_custom_call.1}
  #allocation0 [shape = 'u32[]', space=smem, size = 0x4, offset = 0x4, fixed_abs, tag = 'smem constant byte address 0x4 - core index']
  #allocation1 [shape = 'u32[144,128]{1,0:T(1,128)}', space=vmem, size = 0x12000, scoped, tag = 'internal scratch']
  %s0 = inlined_call_operand.hbm [shape: f32[2,16,32], index: 0, kind: input, shape index: {}]
  %s1 = inlined_call_operand.hbm [shape: bf16[32,384], index: 1, kind: input, shape index: {}]
  %s2 = inlined_call_operand.hbm [shape: bf16[2,16,384], index: 2, kind: output, shape index: {}]
  %s3 = sld [smem:[#allocation0]]
  $region49: #{tpu_custom_call.1} parent=0
    _
  %s5 = ssub.s32 1, %s3
  %s6 = scalar_select 0, %s5, %s3
  $region1: #{tpu_custom_call.1} parent=0
    #allocation2 [shape = 'u8[16384]{0}', space=vmem, size = 0x4000, scoped, tag = 'input window, operand 0']
    #allocation3 [shape = 's32[2]{0}', space=sflag, size = 0x8, scoped, tag = 'scoped memory for tpu_custom_call.1']
    #allocation4 [shape = 's32[2]{0}', space=sflag, size = 0x8, scoped, tag = 'scoped memory for tpu_custom_call.1']
    #allocation5 [shape = 'u8[24576]{0}', space=vmem, size = 0x6000, scoped, tag = 'input window, operand 1, single buffered']
    #allocation6 [shape = 's32[1]{0}', space=sflag, size = 0x4, scoped, tag = 'scoped memory for tpu_custom_call.1']
    #allocation7 [shape = 'u8[24576]{0}', space=vmem, size = 0x6000, scoped, tag = 'output window, operand 0']
    %7 = vsyncpa [#allocation3], 0
    %s8 = scalar_lea.sflag [#allocation3], 1
    %9 = vsyncpa %s8, 0
    %10 = vsyncpa [#allocation6], 0
    %11 = vsyncpa [#allocation4], 0
    %s12 = scalar_lea.sflag [#allocation4], 1
    %13 = vsyncpa %s12, 0
    loop: start=0, step=1, limit=4
    $region2: #{tpu_custom_call.1} parent=1 // loop_pre_header
      _
    $region3: #{tpu_custom_call.1} parent=1 // loop_header
      %s15 = sphi 0, %s19
      %p16 = scmp.ge.s32.totalorder %s15, 4
      %s22 = sphi 0, %s34
      %s23 = sphi 0, %s30
      %s24 = sphi 0, %s22
      %s25 = sphi 0, %s23
      %s26 = sphi 0, %s24
      %s27 = sphi 0, %s25
      %s39 = sphi 0, %s41
      %s42 = sphi 0, %s39
      %s43 = sphi 0, %s42
      %s59 = sphi 0, %s43
      %s63 = sphi 0, %s63
      %s65 = sphi 0, %s63
      %s66 = sphi 0, %s65
      %s80 = sphi 0, %s66
      %s88 = sphi 0, %s90
      %s91 = sphi 0, %s88
      %s92 = sphi 0, %s91
      %s108 = sphi 0, %s92
    $region4: #{tpu_custom_call.1} parent=1 // loop_header_branch
      %18 = sbr.rel (%p16) target = $region8
    $region5: #{tpu_custom_call.1} parent=1 // loop_body
      %s20 = ssub.s32 %s15, 1
      %s21 = ssub.s32 %s15, 2
      %s28 = sadd.s32 1, %s23
      %p29 = scmp.ge.s32.totalorder %s28, 1
      %s30 = scalar_select %p29, 0, %s28
      %s31 = sadd.s32 1, %s22
      %s32 = scalar_select %p29, %s31, %s22
      %p33 = scmp.ge.s32.totalorder %s32, 2
      %s34 = scalar_select %p33, 0, %s32
      %s35 = ssub.s32 %s22, %s34
      %s36 = ssub.s32 %s23, %s30
      %s37 = sor.u32 %s35, %s36
      %p38 = scmp.eq.s32.totalorder %s37, 0
      %s40 = sadd.s32 %s39, 1
      %s41 = scalar_select %p38, %s39, %s40
      %p44 = pneg %p38
      %p45 = scmp.eq.s32.totalorder %s15, 1
      %p46 = por %p44, %p45
      %p47 = scmp.ne.s32.totalorder %s39, %s42
      %p48 = scmp.eq.s32.totalorder %s15, 0
      %p49 = por %p47, %p48
      %p50 = scmp.ne.s32.totalorder %s39, %s42
      %p51 = scmp.eq.s32.totalorder %s20, 1
      %p52 = por %p50, %p51
      %p53 = scmp.ne.s32.totalorder %s42, %s43
      %p54 = scmp.eq.s32.totalorder %s20, 0
      %p55 = por %p53, %p54
      %p56 = scmp.ne.s32.totalorder %s42, %s43
      %p57 = scmp.eq.s32.totalorder %s21, 1
      %p58 = por %p56, %p57
      %p60 = scmp.ne.s32.totalorder %s43, %s59
      %p61 = scmp.eq.s32.totalorder %s21, 0
      %p62 = por %p60, %p61
      %s64 = sadd.s32 %s63, 1
      %p67 = scmp.eq.s32.totalorder %s15, 1
      %p68 = scmp.ne.s32.totalorder %s63, %s65
      %p69 = scmp.eq.s32.totalorder %s15, 0
      %p70 = por %p68, %p69
      %p71 = scmp.ne.s32.totalorder %s63, %s65
      %p72 = scmp.eq.s32.totalorder %s20, 1
      %p73 = por %p71, %p72
      %p74 = scmp.ne.s32.totalorder %s65, %s66
      %p75 = scmp.eq.s32.totalorder %s20, 0
      %p76 = por %p74, %p75
      %p77 = scmp.ne.s32.totalorder %s65, %s66
      %p78 = scmp.eq.s32.totalorder %s21, 1
      %p79 = por %p77, %p78
      %p81 = scmp.ne.s32.totalorder %s66, %s80
      %p82 = scmp.eq.s32.totalorder %s21, 0
      %p83 = por %p81, %p82
      %s84 = ssub.s32 %s22, %s34
      %s85 = ssub.s32 %s23, %s30
      %s86 = sor.u32 %s84, %s85
      %p87 = scmp.eq.s32.totalorder %s86, 0
      %s89 = sadd.s32 %s88, 1
      %s90 = scalar_select %p87, %s88, %s89
      %p93 = pneg %p87
      %p94 = scmp.eq.s32.totalorder %s15, 1
      %p95 = por %p93, %p94
      %p96 = scmp.ne.s32.totalorder %s88, %s91
      %p97 = scmp.eq.s32.totalorder %s15, 0
      %p98 = por %p96, %p97
      %p99 = scmp.ne.s32.totalorder %s88, %s91
      %p100 = scmp.eq.s32.totalorder %s20, 1
      %p101 = por %p99, %p100
      %p102 = scmp.ne.s32.totalorder %s91, %s92
      %p103 = scmp.eq.s32.totalorder %s20, 0
      %p104 = por %p102, %p103
      %p105 = scmp.ne.s32.totalorder %s91, %s92
      %p106 = scmp.eq.s32.totalorder %s21, 1
      %p107 = por %p105, %p106
      %p109 = scmp.ne.s32.totalorder %s92, %s108
      %p110 = scmp.eq.s32.totalorder %s21, 0
      %p111 = por %p109, %p110
      %p112 = scmp.le.s32.totalorder 1, %s15
      %p113 = scmp.lt.s32.totalorder %s15, 3
      %p114 = pnand %p112, %p113
      %p115 = pneg %p114
      // Predicated region
      $region9: #{tpu_custom_call.1} parent=5 // pred_check
        _
      $region10: #{tpu_custom_call.1} parent=5 // pred_check_branch
        %117 = sbr.rel (%p114) target = $region12
      $region11: #{tpu_custom_call.1} parent=5 // pred_region
        %s118 = ssub.s32 %s15, 1
        // Predicated region
        $region13: #{tpu_custom_call.1} parent=11 // pred_check
          %p119 = pneg %p76
        $region14: #{tpu_custom_call.1} parent=11 // pred_check_branch
          %121 = sbr.rel (%p119) target = $region16
        $region15: #{tpu_custom_call.1} parent=11 // pred_region
          %s123 = ssub.s32 768, 768
          %124 = vsyncadd [#allocation6], %s123
          %s125 = sshll.u32 [#allocation5], 4
          %s126 = int_to_ptr.vmem [resolvable:$true] %s125
          %131 = dma.hbm_to_vmem [thread:$0]  %s1, 768, %s126, [#allocation6], 192, 192, 12
        $region16: #{tpu_custom_call.1} parent=11 // pred_fallthru
          _
      $region12: #{tpu_custom_call.1} parent=5 // pred_fallthru
        _
      %p132 = scmp.lt.s32.totalorder %s15, 2
      // Predicated region
      $region17: #{tpu_custom_call.1} parent=5 // pred_check
        %p133 = pneg %p132
      $region18: #{tpu_custom_call.1} parent=5 // pred_check_branch
        %135 = sbr.rel (%p133) target = $region20
      $region19: #{tpu_custom_call.1} parent=5 // pred_region
        // Predicated region
        $region21: #{tpu_custom_call.1} parent=19 // pred_check
          %p136 = pneg %p49
        $region22: #{tpu_custom_call.1} parent=19 // pred_check_branch
          %138 = sbr.rel (%p136) target = $region24
        $region23: #{tpu_custom_call.1} parent=19 // pred_region
          %s139 = sand.u32 %s39, 1
          %s140 = scalar_lea.sflag [#allocation3], %s139
          %s141 = sand.u32 %s39, 1
          %s142 = smul.addr %s141, 16
          %s143 = scalar_lea.vmem [#allocation2], %s142
          %s144 = smul.u32 2, %s23
          %s146 = ssub.s32 256, 256
          %147 = vsyncadd %s140, %s146
          %s148 = smul.addr %s22, 2
          %s149 = sadd.s32 %s144, %s148
          %s150 = smul.addr %s149, 128
          %s151 = scalar_lea.hbm %s0, %s150
          %s152 = sshll.u32 %s143, 4
          %s153 = int_to_ptr.vmem [resolvable:$true] %s152
          %158 = dma.hbm_to_vmem [thread:$0]  %s151, 256, %s153, %s140, 128, 128, 8
        $region24: #{tpu_custom_call.1} parent=19 // pred_fallthru
          _
      $region20: #{tpu_custom_call.1} parent=5 // pred_fallthru
        _
      %p159 = scmp.le.s32.totalorder 1, %s15
      %p160 = scmp.lt.s32.totalorder %s15, 3
      %p161 = pnand %p159, %p160
      %p162 = pneg %p161
      // Predicated region
      $region25: #{tpu_custom_call.1} parent=5 // pred_check
        _
      $region26: #{tpu_custom_call.1} parent=5 // pred_check_branch
        %164 = sbr.rel (%p161) target = $region28
      $region27: #{tpu_custom_call.1} parent=5 // pred_region
        %s165 = ssub.s32 %s15, 1
        %s166 = sand.u32 %s42, 1
        %s167 = scalar_lea.sflag [#allocation3], %s166
        %s168 = sand.u32 %s42, 1
        %s169 = smul.addr %s168, 16
        %s170 = scalar_lea.vmem [#allocation2], %s169
        // Predicated region
        $region29: #{tpu_custom_call.1} parent=27 // pred_check
          %p171 = pneg %p55
        $region30: #{tpu_custom_call.1} parent=27 // pred_check_branch
          %173 = sbr.rel (%p171) target = $region32
        $region31: #{tpu_custom_call.1} parent=27 // pred_region
          %174 = dma.done %s167, 256
        $region32: #{tpu_custom_call.1} parent=27 // pred_fallthru
          _
        // Predicated region
        $region33: #{tpu_custom_call.1} parent=27 // pred_check
          %p175 = pneg %p76
        $region34: #{tpu_custom_call.1} parent=27 // pred_check_branch
          %177 = sbr.rel (%p175) target = $region36
        $region35: #{tpu_custom_call.1} parent=27 // pred_region
          %178 = dma.done [#allocation6], 768
        $region36: #{tpu_custom_call.1} parent=27 // pred_fallthru
          _
        %s179 = sand.u32 %s42, 1
        %s180 = scalar_lea.sflag [#allocation3], %s179
        %s181 = sand.u32 %s42, 1
        %s182 = smul.addr %s181, 16
        %s183 = scalar_lea.vmem [#allocation2], %s182
        %p184 = pneg %p55
        %p185 = pneg %p52
        %p186 = pneg %p76
        %p187 = pneg %p73
        %p188 = pneg %p104
        %p189 = pneg %p101
        %s190 = sand.u32 %s91, 1
        %s191 = scalar_lea.sflag [#allocation4], %s190
        %s192 = sand.u32 %s91, 1
        %s193 = smul.addr %s192, 24
        %s194 = scalar_lea.vmem [#allocation7], %s193
        %s195 = smul.u32 2, %s25
        %s196 = smul.u32 2, %s25
        %v198 = vld [vmem:[%s170] sm:$0xff]
        %v199 = vld [vmem:[%s170 + $0x8] sm:$0xff]
        %v200 = vpack.c.bf16 %v199, %v198
        %v201 = vld [vmem:[#allocation5] sm:$0xff]
        %v202 = vld [vmem:[#allocation5 + $0x8] sm:$0xf]
        %v203 = vld [vmem:[#allocation5 + $0xc] sm:$0xff]
        %v204 = vld [vmem:[#allocation5 + $0x14] sm:$0xf]
        %v205 = vld [vmem:[#allocation5 + $0x18] sm:$0xff]
        %v206 = vld [vmem:[#allocation5 + $0x20] sm:$0xf]
        %v207 = vld [vmem:[#allocation5 + $0x24] sm:$0xff]
        %v208 = vld [vmem:[#allocation5 + $0x2c] sm:$0xf]
        %v217 = vunpack.c.l.b16 %v201
        %v218 = vunpack.c.h.b16 %v201
        %v219 = vunpack.c.l.b16 %v202
        %v220 = vunpack.c.l.b16 %v203
        %v221 = vunpack.c.h.b16 %v203
        %v222 = vunpack.c.l.b16 %v204
        %v223 = vunpack.c.l.b16 %v205
        %v224 = vunpack.c.h.b16 %v205
        %v225 = vunpack.c.l.b16 %v206
        %v226 = vunpack.c.l.b16 %v207
        %v227 = vunpack.c.h.b16 %v207
        %v228 = vunpack.c.l.b16 %v208
        %v229 = vpack.c.b16 %v220, %v217
        %v230 = vpack.c.b16 %v221, %v218
        %v231 = vpack.c.b16 %v222, %v219
        %v232 = vpack.c.b16 %v226, %v223
        %v233 = vpack.c.b16 %v227, %v224
        %v234 = vpack.c.b16 %v228, %v225
        %vm241 = vcmask 261120
        %v243 = vsel %vm241, %v200, 0
        %245 = vmatprep.subr.bf16.mxu0 %v230
        %246 = vmatpush1.bf16.msra.mxu0 %v229
        %247 = vmatprep.subr.bf16.mxu0 %v233
        %248 = vmatpush1.bf16.msra.mxu0 %v232
        %249 = vmatprep.subr.bf16.mxu0 0
        %250 = vmatpush1.bf16.msra.mxu0 0
        %251 = vmatprep.subr.bf16.mxu0 0
        %252 = vmatpush1.bf16.msra.mxu0 0
        %253 = vmatprep.subr.bf16.mxu0 0
        %254 = vmatpush1.bf16.msra.mxu0 0
        %255 = vmatprep.subr.bf16.mxu0 0
        %256 = vmatpush1.bf16.msra.mxu0 0
        %257 = vmatprep.subr.bf16.mxu0 0
        %258 = vmatpush1.bf16.msra.mxu0 0
        %259 = vmatprep.subr.bf16.mxu0 0
        %260 = vmatpush1.bf16.msra.mxu0 0
        %261 = vmatprep.subr.bf16.mxu0 0
        %262 = vmatpush1.bf16.msra.mxu0 0
        %263 = vmatprep.subr.bf16.mxu0 0
        %264 = vmatpush1.bf16.msra.mxu0 0
        %265 = vmatprep.subr.bf16.mxu0 0
        %266 = vmatpush1.bf16.msra.mxu0 0
        %267 = vmatprep.subr.bf16.mxu0 0
        %268 = vmatpush1.bf16.msra.mxu0 0
        %269 = vmatprep.subr.bf16.mxu0 0
        %270 = vmatpush1.bf16.msra.mxu0 0
        %271 = vmatprep.subr.bf16.mxu0 0
        %272 = vmatpush1.bf16.msra.mxu0 0
        %273 = vmatprep.subr.bf16.mxu0 0
        %274 = vmatpush1.bf16.msra.mxu0 0
        %275 = vmatprep.subr.bf16.mxu0 0
        %276 = vmatpush1.bf16.msra.mxu0 0
        %277 = vmatprep.mubr.bf16.mxu0 0
        %278 = vmatmul.mubr.bf16.gmra.mrb[0].mxu0 %v243
        %v279 = vpop.f32.mrb[0].mxu0
        %v280 = vadd.f32 0.0, %v279
        %v281 = vpop.f32.mrb[0].mxu0
        %v282 = vadd.f32 0.0, %v281
        %v283 = vpop.f32.mrb[0].mxu0
        %v284 = vadd.f32 0.0, %v283
        %v285 = vpop.f32.mrb[0].mxu0
        %v286 = vadd.f32 0.0, %v285
        %287 = vdwg.mxu0
        %288 = vmatprep.subr.bf16.mxu0 0
        %289 = vmatpush1.bf16.msra.mxu0 %v231
        %290 = vmatprep.subr.bf16.mxu0 0
        %291 = vmatpush1.bf16.msra.mxu0 %v234
        %292 = vmatprep.subr.bf16.mxu0 0
        %293 = vmatpush1.bf16.msra.mxu0 0
        %294 = vmatprep.subr.bf16.mxu0 0
        %295 = vmatpush1.bf16.msra.mxu0 0
        %296 = vmatprep.subr.bf16.mxu0 0
        %297 = vmatpush1.bf16.msra.mxu0 0
        %298 = vmatprep.subr.bf16.mxu0 0
        %299 = vmatpush1.bf16.msra.mxu0 0
        %300 = vmatprep.subr.bf16.mxu0 0
        %301 = vmatpush1.bf16.msra.mxu0 0
        %302 = vmatprep.subr.bf16.mxu0 0
        %303 = vmatpush1.bf16.msra.mxu0 0
        %304 = vmatprep.subr.bf16.mxu0 0
        %305 = vmatpush1.bf16.msra.mxu0 0
        %306 = vmatprep.subr.bf16.mxu0 0
        %307 = vmatpush1.bf16.msra.mxu0 0
        %308 = vmatprep.subr.bf16.mxu0 0
        %309 = vmatpush1.bf16.msra.mxu0 0
        %310 = vmatprep.subr.bf16.mxu0 0
        %311 = vmatpush1.bf16.msra.mxu0 0
        %312 = vmatprep.subr.bf16.mxu0 0
        %313 = vmatpush1.bf16.msra.mxu0 0
        %314 = vmatprep.subr.bf16.mxu0 0
        %315 = vmatpush1.bf16.msra.mxu0 0
        %316 = vmatprep.subr.bf16.mxu0 0
        %317 = vmatpush1.bf16.msra.mxu0 0
        %318 = vmatprep.subr.bf16.mxu0 0
        %319 = vmatpush1.bf16.msra.mxu0 0
        %320 = vmatprep.mubr.bf16.mxu0 0
        %321 = vmatmul.mubr.bf16.gmra.mrb[0].mxu0 %v243
        %v322 = vpop.f32.mrb[0].mxu0
        %v323 = vadd.f32 0.0, %v322
        %v324 = vpop.f32.mrb[0].mxu0
        %v325 = vpop.f32.mrb[0].mxu0
        %v326 = vadd.f32 0.0, %v325
        %v327 = vpop.f32.mrb[0].mxu0
        %328 = vdwg.mxu0
        %v329 = vpack.c.bf16 %v284, %v280
        %v330 = vpack.c.bf16 %v286, %v282
        %v331 = vpack.c.bf16 %v326, %v323
        %v335 = vunpack.c.l.b16 %v329
        %v336 = vunpack.c.l.b16 %v330
        %v337 = vunpack.c.l.b16 %v331
        %v338 = vunpack.c.h.b16 %v329
        %v339 = vunpack.c.h.b16 %v330
        %v340 = vunpack.c.h.b16 %v331
        %v341 = vpack.c.b16 %v336, %v335
        %v342 = vpack.c.b16 %v337, %v337
        %v343 = vpack.c.b16 %v339, %v338
        %v344 = vpack.c.b16 %v340, %v340
        %349 = vst [vmem:[%s194] sm:$0xff] %v341
        %350 = vst [vmem:[%s194 + $0x8] sm:$0xf] %v342
        %351 = vst [vmem:[%s194 + $0xc] sm:$0xff] %v343
        %352 = vst [vmem:[%s194 + $0x14] sm:$0xf] %v344
        %s353 = sand.u32 %s91, 1
        %s354 = scalar_lea.sflag [#allocation4], %s353
        %s355 = sand.u32 %s91, 1
        %s356 = smul.addr %s355, 24
        %s357 = scalar_lea.vmem [#allocation7], %s356
        // Predicated region
        $region37: #{tpu_custom_call.1} parent=27 // pred_check
          %p358 = pneg %p101
        $region38: #{tpu_custom_call.1} parent=27 // pred_check_branch
          %360 = sbr.rel (%p358) target = $region40
        $region39: #{tpu_custom_call.1} parent=27 // pred_region
          %s361 = smul.u32 2, %s25
          %s363 = ssub.s32 384, 384
          %364 = vsyncadd %s354, %s363
          %s365 = smul.addr %s361, 3
          %s366 = smul.addr %s24, 6
          %s367 = sadd.s32 %s365, %s366
          %s368 = smul.addr %s367, 64
          %s369 = scalar_lea.hbm %s2, %s368
          %s370 = sshll.u32 %s357, 4
          %s371 = int_to_ptr.vmem [resolvable:$true] %s370
          %376 = dma.vmem_to_hbm [thread:$0]  %s371, 384, %s369, %s354, 192, 192, 12
        $region40: #{tpu_custom_call.1} parent=27 // pred_fallthru
          _
      $region28: #{tpu_custom_call.1} parent=5 // pred_fallthru
        _
      %p377 = scmp.le.s32.totalorder 2, %s15
      // Predicated region
      $region41: #{tpu_custom_call.1} parent=5 // pred_check
        %p378 = pneg %p377
      $region42: #{tpu_custom_call.1} parent=5 // pred_check_branch
        %380 = sbr.rel (%p378) target = $region44
      $region43: #{tpu_custom_call.1} parent=5 // pred_region
        %s381 = ssub.s32 %s15, 2
        // Predicated region
        $region45: #{tpu_custom_call.1} parent=43 // pred_check
          %p382 = pneg %p107
        $region46: #{tpu_custom_call.1} parent=43 // pred_check_branch
          %384 = sbr.rel (%p382) target = $region48
        $region47: #{tpu_custom_call.1} parent=43 // pred_region
          %s385 = sand.u32 %s92, 1
          %s386 = scalar_lea.sflag [#allocation4], %s385
          %s387 = sand.u32 %s92, 1
          %s388 = smul.addr %s387, 24
          %s389 = scalar_lea.vmem [#allocation7], %s388
          %390 = dma.done %s386, 384
        $region48: #{tpu_custom_call.1} parent=43 // pred_fallthru
          _
      $region44: #{tpu_custom_call.1} parent=5 // pred_fallthru
        _
    $region6: #{tpu_custom_call.1} parent=1 // loop_footer
      %s19 = sadd.s32 1, %s15
    $region7: #{tpu_custom_call.1} parent=1 // loop_footer_branch
      %14 = sbr.rel target = $region3
    $region8: #{tpu_custom_call.1} parent=1 // loop_exit
      _
    %391 = vsyncpa [#allocation3], 1
    %s392 = scalar_lea.sflag [#allocation3], 1
    %393 = vsyncpa %s392, 1
    %394 = vsyncpa [#allocation6], 1
    %395 = vsyncpa [#allocation4], 1
    %s396 = scalar_lea.sflag [#allocation4], 1
    %397 = vsyncpa %s396, 1

</llo_original>
